<compile_context>
chip_gen: v7x
topology: tpu7x:2x2x1
jax: 0.10.0
libtpu: 0.0.40
codegen_flags: <defaults>
</compile_context>

<pallas_src>
import jax
import jax.numpy as jnp
from jax.experimental import pallas as pl
from jax.experimental.pallas import tpu as pltpu


def waveprobe_kernel(flat_ref, x_ref, o_ref):
    # flat_ref : VMEM (1, TP)  int32 flattened probe indices (row*W + col) for this tile
    # x_ref    : VMEM (B, HW)  whole flattened wave field (constant index_map -> resident)
    # o_ref    : VMEM (B, TP)  output slice owned by this probe tile
    x = x_ref[...]                                            # (B, HW)
    hw = x.shape[1]
    tp = o_ref.shape[1]

    # One-hot selection matrix: sel[hw, p] = (hw == flat[p]).  Built once per
    # probe tile (VPU compare), consumed by a single MXU matmul.
    sel = (jax.lax.broadcasted_iota(jnp.int32, (hw, tp), 0)
           == flat_ref[...]).astype(x.dtype)                  # (HW, TP)

    # (B, HW) @ (HW, TP) -> (B, TP): exact gather (one non-zero term per lane).
    o_ref[...] = jnp.dot(x, sel,
                         preferred_element_type=jnp.float32).astype(o_ref.dtype)


def wave_probe(x, px, py):
    """Pallas equivalent of WaveProbe(px, py)(x) == x[:, px, py]."""
    B, H, W = x.shape
    P = int(px.shape[0])

    TP = 128                                   # probes per grid step (lane width)
    n_tiles = pl.cdiv(P, TP)
    P_pad = n_tiles * TP

    # Glue (wrapper-side, outside the kernel):
    #  * int32 coords, wrap negatives like PyTorch advanced indexing
    #  * flatten probe coords to a single (row*W + col) index
    #  * flatten the field to (B, H*W) so the kernel sees one lane-dense block
    px_i = px.astype(jnp.int32) % jnp.int32(H)
    py_i = py.astype(jnp.int32) % jnp.int32(W)
    flat = px_i * jnp.int32(W) + py_i                          # (P,)
    flat = jnp.pad(flat, (0, P_pad - P)).reshape(1, P_pad)     # (1, P_pad)
    x_flat = x.reshape(B, H * W)                               # (B, HW)

    itemsize = x.dtype.itemsize
    out_padded = pl.pallas_call(
        waveprobe_kernel,
        out_shape=jax.ShapeDtypeStruct((B, P_pad), x.dtype),
        grid=(n_tiles,),
        in_specs=[
            pl.BlockSpec((1, TP), lambda j: (0, j)),           # probe indices tile
            pl.BlockSpec((B, H * W), lambda j: (0, 0)),        # whole field, resident
        ],
        out_specs=pl.BlockSpec((B, TP), lambda j: (0, j)),     # disjoint slice per tile
        compiler_params=pltpu.CompilerParams(
            dimension_semantics=("parallel",),                 # shardable on v7x (2 TCs)
        ),
        cost_estimate=pl.CostEstimate(
            flops=2 * B * H * W * P_pad,                       # one-hot matmul
            transcendentals=0,
            bytes_accessed=(B * H * W * itemsize               # field read (once)
                            + P_pad * 4                        # probe indices
                            + B * P_pad * itemsize),           # output write
        ),
    )(flat, x_flat)

    return out_padded[:, :P]                                   # strip lane padding (glue)


if __name__ == "__main__":
    key = jax.random.PRNGKey(0)
    B, H, W, P = 2, 16, 16, 8
    k1, k2, k3 = jax.random.split(key, 3)

    # Deterministic example inputs (the module's buffers x, y are the probe
    # coordinates; initialized in-script, not loaded from a checkpoint).
    x = jax.random.normal(k1, (B, H, W), dtype=jnp.float32)
    px = jax.random.randint(k2, (P,), 0, H, dtype=jnp.int32)
    py = jax.random.randint(k3, (P,), 0, W, dtype=jnp.int32)

    out = wave_probe(x, px, py)
    jax.block_until_ready(out)

    # Reference: exact PyTorch semantics x[:, px, py]
    ref = x[:, px, py]
    assert out.shape == (B, P)
    assert jnp.allclose(out, ref, atol=1e-6), "Pallas WaveProbe mismatch"
    print("KERNEL_OK")
</pallas_src>

<mosaic_0001>
module attributes {stable_mosaic.version = 11 : i64} {
  func.func @waveprobe_kernel(%arg0: i32, %arg1: memref<1x128xi32, #tpu.memory_space<vmem>>, %arg2: memref<2x256xf32, #tpu.memory_space<vmem>>, %arg3: memref<2x128xf32, #tpu.memory_space<vmem>>) attributes {dimension_semantics = [#tpu.dimension_semantics<parallel>], iteration_bounds = array<i64: 1>, scalar_prefetch = 0 : i64, scratch_operands = 0 : i64, tpu.core_type = #tpu.core_type<tc>, window_params = [{transform_indices = @transform_0, window_bounds = array<i64: 1, 128>}, {pipeline_mode = #tpu.pipeline_mode<synchronous>, transform_indices = @transform_1, window_bounds = array<i64: 2, 256>}, {transform_indices = @transform_2, window_bounds = array<i64: 2, 128>}]} {
    %c0 = arith.constant 0 : index
    %c0_0 = arith.constant 0 : index
    %0 = vector.load %arg2[%c0, %c0_0] : memref<2x256xf32, #tpu.memory_space<vmem>>, vector<2x256xf32>
    %1 = tpu.iota {dimensions = array<i32: 0>} : vector<256x128xi32>
    %c0_1 = arith.constant 0 : index
    %c0_2 = arith.constant 0 : index
    %2 = vector.load %arg1[%c0_1, %c0_2] : memref<1x128xi32, #tpu.memory_space<vmem>>, vector<1x128xi32>
    %3 = vector.broadcast %2 : vector<1x128xi32> to vector<256x128xi32>
    %4 = arith.cmpi eq, %1, %3 : vector<256x128xi32>
    %5 = arith.extui %4 : vector<256x128xi1> to vector<256x128xi32>
    %6 = arith.sitofp %5 : vector<256x128xi32> to vector<256x128xf32>
    %cst = arith.constant dense<0.000000e+00> : vector<2x128xf32>
    %7 = tpu.matmul %0, %6, %cst {dimension_numbers = #tpu.dot_dimension_numbers<[1], [0], [0], [1], [0, 0, 1, 1], [], []>} : vector<2x256xf32>, vector<256x128xf32>, vector<2x128xf32> -> vector<2x128xf32>
    %c0_3 = arith.constant 0 : index
    %c0_4 = arith.constant 0 : index
    %8 = vector.load %arg3[%c0_3, %c0_4] : memref<2x128xf32, #tpu.memory_space<vmem>>, vector<2x128xf32>
    tpu.vector_store %arg3[%c0_3, %c0_4], %7 {strides = array<i32>} : memref<2x128xf32, #tpu.memory_space<vmem>>, vector<2x128xf32>,
    return
  }
  func.func @transform_0(%arg0: i32) -> (i32, i32) {
    %c0_i32 = arith.constant 0 : i32
    %c0_i32_0 = arith.constant 0 : i32
    return %c0_i32, %arg0 : i32, i32
  }
  func.func @transform_1(%arg0: i32) -> (i32, i32) {
    %c0_i32 = arith.constant 0 : i32
    %c0_i32_0 = arith.constant 0 : i32
    %c0_i32_1 = arith.constant 0 : i32
    return %c0_i32, %c0_i32_0 : i32, i32
  }
  func.func @transform_2(%arg0: i32) -> (i32, i32) {
    %c0_i32 = arith.constant 0 : i32
    %c0_i32_0 = arith.constant 0 : i32
    return %c0_i32, %arg0 : i32, i32
  }
}

</mosaic_0001>

<llo_original>
// kernel: tpu_custom_call.1
$region0: #{tpu_custom_call.1}
  #allocation0 [shape = 'u32[]', space=smem, size = 0x4, offset = 0x4, fixed_abs, tag = 'smem constant byte address 0x4 - core index']
  #allocation1 [shape = 'u32[144,128]{1,0:T(1,128)}', space=vmem, size = 0x12000, scoped, tag = 'internal scratch']
  %s0 = inlined_call_operand.hbm [shape: s32[1,128], index: 0, kind: input, shape index: {}]
  %s1 = inlined_call_operand.hbm [shape: f32[2,256], index: 1, kind: input, shape index: {}]
  %s2 = inlined_call_operand.hbm [shape: f32[2,128], index: 2, kind: output, shape index: {}]
  %s3 = sld [smem:[#allocation0]]
  $region26: #{tpu_custom_call.1} parent=0
    _
  %s5 = ssub.s32 1, %s3
  %s6 = scalar_select 0, %s5, %s3
  $region1: #{tpu_custom_call.1} parent=0
    #allocation2 [shape = 'u8[512]{0}', space=vmem, size = 0x400, scoped, tag = 'input window, operand 0, single buffered']
    #allocation3 [shape = 's32[1]{0}', space=sflag, size = 0x4, scoped, tag = 'scoped memory for tpu_custom_call.1']
    #allocation4 [shape = 's32[1]{0}', space=sflag, size = 0x4, scoped, tag = 'scoped memory for tpu_custom_call.1']
    #allocation5 [shape = 'u8[2048]{0}', space=vmem, size = 0x800, scoped, tag = 'input window, operand 1, single buffered']
    #allocation6 [shape = 's32[1]{0}', space=sflag, size = 0x4, scoped, tag = 'scoped memory for tpu_custom_call.1']
    #allocation7 [shape = 'u8[1024]{0}', space=vmem, size = 0x400, scoped, tag = 'output window, operand 0, single buffered']
    %7 = vsyncpa [#allocation3], 0
    %8 = vsyncpa [#allocation6], 0
    %9 = vsyncpa [#allocation4], 0
    // Predicated region
    $region2: #{tpu_custom_call.1} parent=1 // pred_check
      _
    $region3: #{tpu_custom_call.1} parent=1 // pred_check_branch
      %11 = sbr.rel (0) target = $region5
    $region4: #{tpu_custom_call.1} parent=1 // pred_region
      %s13 = ssub.s32 16, 16
      %14 = vsyncadd [#allocation3], %s13
      %s16 = sshll.u32 [#allocation2], 4
      %s17 = int_to_ptr.vmem [resolvable:$true] %s16
      %19 = dma.hbm_to_vmem [thread:$0]  %s0, 16, %s17, [#allocation3]
    $region5: #{tpu_custom_call.1} parent=1 // pred_fallthru
      _
    // Predicated region
    $region6: #{tpu_custom_call.1} parent=1 // pred_check
      _
    $region7: #{tpu_custom_call.1} parent=1 // pred_check_branch
      %21 = sbr.rel (0) target = $region9
    $region8: #{tpu_custom_call.1} parent=1 // pred_region
      %s23 = ssub.s32 64, 64
      %24 = vsyncadd [#allocation6], %s23
      %s26 = sshll.u32 [#allocation5], 4
      %s27 = int_to_ptr.vmem [resolvable:$true] %s26
      %29 = dma.hbm_to_vmem [thread:$0]  %s1, 64, %s27, [#allocation6]
    $region9: #{tpu_custom_call.1} parent=1 // pred_fallthru
      _
    // Predicated region
    $region10: #{tpu_custom_call.1} parent=1 // pred_check
      _
    $region11: #{tpu_custom_call.1} parent=1 // pred_check_branch
      %31 = sbr.rel (0) target = $region13
    $region12: #{tpu_custom_call.1} parent=1 // pred_region
      %32 = dma.done [#allocation3], 16
    $region13: #{tpu_custom_call.1} parent=1 // pred_fallthru
      _
    // Predicated region
    $region14: #{tpu_custom_call.1} parent=1 // pred_check
      _
    $region15: #{tpu_custom_call.1} parent=1 // pred_check_branch
      %34 = sbr.rel (0) target = $region17
    $region16: #{tpu_custom_call.1} parent=1 // pred_region
      %35 = dma.done [#allocation6], 64
    $region17: #{tpu_custom_call.1} parent=1 // pred_fallthru
      _
    %v36 = vld [vmem:[#allocation5] sm:$0xf]
    %v37 = vlaneseq
    %v38 = vshrl.u32 %v37, 7
    %v39 = vadd.s32 %v38, 8
    %v40 = vadd.s32 %v38, 16
    %v41 = vadd.s32 %v38, 24
    %v42 = vadd.s32 %v38, 32
    %v43 = vadd.s32 %v38, 40
    %v44 = vadd.s32 %v38, 48
    %v45 = vadd.s32 %v38, 56
    %v46 = vadd.s32 %v38, 64
    %v47 = vadd.s32 %v38, 72
    %v48 = vadd.s32 %v38, 80
    %v49 = vadd.s32 %v38, 88
    %v50 = vadd.s32 %v38, 96
    %v51 = vadd.s32 %v38, 104
    %v52 = vadd.s32 %v38, 112
    %v53 = vadd.s32 %v38, 120
    %v54 = vadd.s32 %v38, 128
    %v55 = vadd.s32 %v38, 136
    %v56 = vadd.s32 %v38, 144
    %v57 = vadd.s32 %v38, 152
    %v58 = vadd.s32 %v38, 160
    %v59 = vadd.s32 %v38, 168
    %v60 = vadd.s32 %v38, 176
    %v61 = vadd.s32 %v38, 184
    %v62 = vadd.s32 %v38, 192
    %v63 = vadd.s32 %v38, 200
    %v64 = vadd.s32 %v38, 208
    %v65 = vadd.s32 %v38, 216
    %v66 = vadd.s32 %v38, 224
    %v67 = vadd.s32 %v38, 232
    %v68 = vadd.s32 %v38, 240
    %v69 = vadd.s32 %v38, 248
    %v70 = vld [vmem:[#allocation2] sm:$0x1]
    %v71 = vlaneseq
    %v72 = vshrl.u32 %v71, 7
    %v73 = vsub.s32 0, %v72
    %v74 = vrot.slane %v70, %v73
    %vm75 = vcmp.eq.s32.totalorder %v38, %v74
    %vm76 = vcmp.eq.s32.totalorder %v39, %v74
    %vm77 = vcmp.eq.s32.totalorder %v40, %v74
    %vm78 = vcmp.eq.s32.totalorder %v41, %v74
    %vm79 = vcmp.eq.s32.totalorder %v42, %v74
    %vm80 = vcmp.eq.s32.totalorder %v43, %v74
    %vm81 = vcmp.eq.s32.totalorder %v44, %v74
    %vm82 = vcmp.eq.s32.totalorder %v45, %v74
    %vm83 = vcmp.eq.s32.totalorder %v46, %v74
    %vm84 = vcmp.eq.s32.totalorder %v47, %v74
    %vm85 = vcmp.eq.s32.totalorder %v48, %v74
    %vm86 = vcmp.eq.s32.totalorder %v49, %v74
    %vm87 = vcmp.eq.s32.totalorder %v50, %v74
    %vm88 = vcmp.eq.s32.totalorder %v51, %v74
    %vm89 = vcmp.eq.s32.totalorder %v52, %v74
    %vm90 = vcmp.eq.s32.totalorder %v53, %v74
    %vm91 = vcmp.eq.s32.totalorder %v54, %v74
    %vm92 = vcmp.eq.s32.totalorder %v55, %v74
    %vm93 = vcmp.eq.s32.totalorder %v56, %v74
    %vm94 = vcmp.eq.s32.totalorder %v57, %v74
    %vm95 = vcmp.eq.s32.totalorder %v58, %v74
    %vm96 = vcmp.eq.s32.totalorder %v59, %v74
    %vm97 = vcmp.eq.s32.totalorder %v60, %v74
    %vm98 = vcmp.eq.s32.totalorder %v61, %v74
    %vm99 = vcmp.eq.s32.totalorder %v62, %v74
    %vm100 = vcmp.eq.s32.totalorder %v63, %v74
    %vm101 = vcmp.eq.s32.totalorder %v64, %v74
    %vm102 = vcmp.eq.s32.totalorder %v65, %v74
    %vm103 = vcmp.eq.s32.totalorder %v66, %v74
    %vm104 = vcmp.eq.s32.totalorder %v67, %v74
    %vm105 = vcmp.eq.s32.totalorder %v68, %v74
    %vm106 = vcmp.eq.s32.totalorder %v69, %v74
    %v107 = vsel %vm75, 1, 0
    %v108 = vsel %vm76, 1, 0
    %v109 = vsel %vm77, 1, 0
    %v110 = vsel %vm78, 1, 0
    %v111 = vsel %vm79, 1, 0
    %v112 = vsel %vm80, 1, 0
    %v113 = vsel %vm81, 1, 0
    %v114 = vsel %vm82, 1, 0
    %v115 = vsel %vm83, 1, 0
    %v116 = vsel %vm84, 1, 0
    %v117 = vsel %vm85, 1, 0
    %v118 = vsel %vm86, 1, 0
    %v119 = vsel %vm87, 1, 0
    %v120 = vsel %vm88, 1, 0
    %v121 = vsel %vm89, 1, 0
    %v122 = vsel %vm90, 1, 0
    %v123 = vsel %vm91, 1, 0
    %v124 = vsel %vm92, 1, 0
    %v125 = vsel %vm93, 1, 0
    %v126 = vsel %vm94, 1, 0
    %v127 = vsel %vm95, 1, 0
    %v128 = vsel %vm96, 1, 0
    %v129 = vsel %vm97, 1, 0
    %v130 = vsel %vm98, 1, 0
    %v131 = vsel %vm99, 1, 0
    %v132 = vsel %vm100, 1, 0
    %v133 = vsel %vm101, 1, 0
    %v134 = vsel %vm102, 1, 0
    %v135 = vsel %vm103, 1, 0
    %v136 = vsel %vm104, 1, 0
    %v137 = vsel %vm105, 1, 0
    %v138 = vsel %vm106, 1, 0
    %v139 = vcvt.s32.f32 %v107
    %v140 = vcvt.s32.f32 %v108
    %v141 = vcvt.s32.f32 %v109
    %v142 = vcvt.s32.f32 %v110
    %v143 = vcvt.s32.f32 %v111
    %v144 = vcvt.s32.f32 %v112
    %v145 = vcvt.s32.f32 %v113
    %v146 = vcvt.s32.f32 %v114
    %v147 = vcvt.s32.f32 %v115
    %v148 = vcvt.s32.f32 %v116
    %v149 = vcvt.s32.f32 %v117
    %v150 = vcvt.s32.f32 %v118
    %v151 = vcvt.s32.f32 %v119
    %v152 = vcvt.s32.f32 %v120
    %v153 = vcvt.s32.f32 %v121
    %v154 = vcvt.s32.f32 %v122
    %v155 = vcvt.s32.f32 %v123
    %v156 = vcvt.s32.f32 %v124
    %v157 = vcvt.s32.f32 %v125
    %v158 = vcvt.s32.f32 %v126
    %v159 = vcvt.s32.f32 %v127
    %v160 = vcvt.s32.f32 %v128
    %v161 = vcvt.s32.f32 %v129
    %v162 = vcvt.s32.f32 %v130
    %v163 = vcvt.s32.f32 %v131
    %v164 = vcvt.s32.f32 %v132
    %v165 = vcvt.s32.f32 %v133
    %v166 = vcvt.s32.f32 %v134
    %v167 = vcvt.s32.f32 %v135
    %v168 = vcvt.s32.f32 %v136
    %v169 = vcvt.s32.f32 %v137
    %v170 = vcvt.s32.f32 %v138
    %v173 = vunpack.c.l.s4 1983009808
    %v174 = vunpack.c.0.s8 %v173
    %v175 = vlaneseq
    %v176 = vshrl.u32 %v175, 7
    %v177 = vsub.s32 %v174, %v176
    %v178 = vrot.slane %v36, %v177
    %v179 = vcombine.high %v178, %v178
    %182 = vmatprep.subr.mxu0 0.0
    %183 = vmatpush1.msra.mxu0 %v139
    %184 = vmatprep.subr.mxu0 0.0
    %185 = vmatpush1.msra.mxu0 %v140
    %186 = vmatprep.subr.mxu0 0.0
    %187 = vmatpush1.msra.mxu0 %v141
    %188 = vmatprep.subr.mxu0 0.0
    %189 = vmatpush1.msra.mxu0 %v142
    %190 = vmatprep.subr.mxu0 0.0
    %191 = vmatpush1.msra.mxu0 %v143
    %192 = vmatprep.subr.mxu0 0.0
    %193 = vmatpush1.msra.mxu0 %v144
    %194 = vmatprep.subr.mxu0 0.0
    %195 = vmatpush1.msra.mxu0 %v145
    %196 = vmatprep.subr.mxu0 0.0
    %197 = vmatpush1.msra.mxu0 %v146
    %198 = vmatprep.subr.mxu0 0.0
    %199 = vmatpush1.msra.mxu0 %v147
    %200 = vmatprep.subr.mxu0 0.0
    %201 = vmatpush1.msra.mxu0 %v148
    %202 = vmatprep.subr.mxu0 0.0
    %203 = vmatpush1.msra.mxu0 %v149
    %204 = vmatprep.subr.mxu0 0.0
    %205 = vmatpush1.msra.mxu0 %v150
    %206 = vmatprep.subr.mxu0 0.0
    %207 = vmatpush1.msra.mxu0 %v151
    %208 = vmatprep.subr.mxu0 0.0
    %209 = vmatpush1.msra.mxu0 %v152
    %210 = vmatprep.subr.mxu0 0.0
    %211 = vmatpush1.msra.mxu0 %v153
    %212 = vmatprep.subr.mxu0 0.0
    %213 = vmatpush1.msra.mxu0 %v154
    %214 = vmatprep.subr.mxu0 0.0
    %215 = vmatpush1.msra.mxu0 %v155
    %216 = vmatprep.subr.mxu0 0.0
    %217 = vmatpush1.msra.mxu0 %v156
    %218 = vmatprep.subr.mxu0 0.0
    %219 = vmatpush1.msra.mxu0 %v157
    %220 = vmatprep.subr.mxu0 0.0
    %221 = vmatpush1.msra.mxu0 %v158
    %222 = vmatprep.subr.mxu0 0.0
    %223 = vmatpush1.msra.mxu0 %v159
    %224 = vmatprep.subr.mxu0 0.0
    %225 = vmatpush1.msra.mxu0 %v160
    %226 = vmatprep.subr.mxu0 0.0
    %227 = vmatpush1.msra.mxu0 %v161
    %228 = vmatprep.subr.mxu0 0.0
    %229 = vmatpush1.msra.mxu0 %v162
    %230 = vmatprep.subr.mxu0 0.0
    %231 = vmatpush1.msra.mxu0 %v163
    %232 = vmatprep.subr.mxu0 0.0
    %233 = vmatpush1.msra.mxu0 %v164
    %234 = vmatprep.subr.mxu0 0.0
    %235 = vmatpush1.msra.mxu0 %v165
    %236 = vmatprep.subr.mxu0 0.0
    %237 = vmatpush1.msra.mxu0 %v166
    %238 = vmatprep.subr.mxu0 0.0
    %239 = vmatpush1.msra.mxu0 %v167
    %240 = vmatprep.subr.mxu0 0.0
    %241 = vmatpush1.msra.mxu0 %v168
    %242 = vmatprep.subr.mxu0 0.0
    %243 = vmatpush1.msra.mxu0 %v169
    %244 = vmatprep.subr.mxu0 0.0
    %245 = vmatpush1.msra.mxu0 %v170
    %246 = vmatprep.mubr.f32.mxu0 %v179
    %247 = vmatmul.mubr.f32.gmra.mrb[0].mxu0 %v178
    %v248 = vpop.f32.mrb[0].mxu0
    %v249 = vadd.f32 0.0, %v248
    %v250 = vpop.f32.mrb[0].mxu0
    %251 = vdwg.mxu0
    %252 = vst [vmem:[#allocation7] sm:$0x3] %v249
    // Predicated region
    $region18: #{tpu_custom_call.1} parent=1 // pred_check
      _
    $region19: #{tpu_custom_call.1} parent=1 // pred_check_branch
      %254 = sbr.rel (0) target = $region21
    $region20: #{tpu_custom_call.1} parent=1 // pred_region
      %s256 = ssub.s32 32, 32
      %257 = vsyncadd [#allocation4], %s256
      %s259 = sshll.u32 [#allocation7], 4
      %s260 = int_to_ptr.vmem [resolvable:$true] %s259
      %262 = dma.vmem_to_hbm [thread:$0]  %s260, 32, %s2, [#allocation4]
    $region21: #{tpu_custom_call.1} parent=1 // pred_fallthru
      _
    // Predicated region
    $region22: #{tpu_custom_call.1} parent=1 // pred_check
      _
    $region23: #{tpu_custom_call.1} parent=1 // pred_check_branch
      %264 = sbr.rel (0) target = $region25
    $region24: #{tpu_custom_call.1} parent=1 // pred_region
      %265 = dma.done [#allocation4], 32
    $region25: #{tpu_custom_call.1} parent=1 // pred_fallthru
      _
    %266 = vsyncpa [#allocation3], 1
    %267 = vsyncpa [#allocation6], 1
    %268 = vsyncpa [#allocation4], 1

</llo_original>
